<compile_context>
chip_gen: v7x
topology: tpu7x:2x2x1
jax: 0.10.0
libtpu: 0.0.40
codegen_flags: <defaults>
</compile_context>

<pallas_src>
import math

import jax
import jax.numpy as jnp
from jax.experimental import pallas as pl
from jax.experimental.pallas import tpu as pltpu

# ---------------------------------------------------------------------------
# Synthetic, deterministic hparams (same math as Diffusion.__init__)
# ---------------------------------------------------------------------------
LOGSNR_MIN = -20.0
LOGSNR_MAX = 20.0
LOGSNR_B = math.atan(math.exp(-LOGSNR_MAX / 2.0))
LOGSNR_A = math.atan(math.exp(-LOGSNR_MIN / 2.0)) - LOGSNR_B

_LANES = 128  # lane width; pad batch to this so the output slab is lane-dense


# ---------------------------------------------------------------------------
# Pallas kernel: fused SNR schedule (logsnr / alpha_sq / sigma_sq)
# ---------------------------------------------------------------------------
def _snr_kernel(t_ref, out_ref):
    # t_ref:   (1, Bp)  float32, Bp multiple of 128 (lane-dense)
    # out_ref: (3, Bp)  float32  rows: [logsnr, alpha_sq, sigma_sq]
    t = t_ref[...]
    x = LOGSNR_A * t + LOGSNR_B
    sin_x = jnp.sin(x)
    cos_x = jnp.cos(x)

    # logsnr = -2*log(tan x) = 2*(log cos x - log sin x)   (no divide)
    logsnr = 2.0 * (jnp.log(cos_x) - jnp.log(sin_x))
    # sigmoid(+/- logsnr) == cos^2 x / sin^2 x              (no exp, no divide)
    alpha_sq = cos_x * cos_x
    sigma_sq = sin_x * sin_x

    # Single lane-dense store of the packed schedule slab.
    out_ref[...] = jnp.concatenate([logsnr, alpha_sq, sigma_sq], axis=0)


# ---------------------------------------------------------------------------
# Wrapper mirroring Diffusion.forward(y, y_l, band, t, z) for z is not None
# ---------------------------------------------------------------------------
def diffusion_forward(y, y_l, band, t, z):
    del y, y_l, band  # only consumed by the external model (z-path bypasses it)

    B = t.shape[0]
    Bp = max(_LANES, ((B + _LANES - 1) // _LANES) * _LANES)
    # Pad with 0.5 (mid-schedule) so padded lanes stay numerically benign.
    t_pad = jnp.pad(t.astype(jnp.float32), (0, Bp - B),
                    constant_values=0.5).reshape(1, Bp)

    sched = pl.pallas_call(
        _snr_kernel,
        out_shape=jax.ShapeDtypeStruct((3, Bp), jnp.float32),
        in_specs=[pl.BlockSpec(memory_space=pltpu.MemorySpace.VMEM)],
        out_specs=pl.BlockSpec(memory_space=pltpu.MemorySpace.VMEM),
    )(t_pad)

    logsnr = sched[0, :B]
    alpha_sq = sched[1, :B]
    sigma_sq = sched[2, :B]

    # noise = z : pure identity, returned directly (no kernel copy, dtype kept).
    noise = z
    return noise, logsnr, (alpha_sq, sigma_sq)


# ---------------------------------------------------------------------------
# Pure-JAX reference (for a quick correctness check)
# ---------------------------------------------------------------------------
def _ref_forward(t, z):
    logsnr = -2.0 * jnp.log(jnp.tan(LOGSNR_A * t + LOGSNR_B))
    alpha_sq = jax.nn.sigmoid(logsnr)
    sigma_sq = jax.nn.sigmoid(-logsnr)
    return z, logsnr, (alpha_sq, sigma_sq)


if __name__ == "__main__":
    key = jax.random.PRNGKey(0)
    k_y, k_yl, k_band, k_t, k_z = jax.random.split(key, 5)

    B, C, L = 8, 1, 256
    y = jax.random.normal(k_y, (B, C, L), dtype=jnp.float32)          # noisy signal
    y_l = jax.random.normal(k_yl, (B, C, L // 4), dtype=jnp.float32)  # conditioning
    band = jax.random.normal(k_band, (B, C, L), dtype=jnp.float32)    # band info
    t = jax.random.uniform(k_t, (B,), dtype=jnp.float32,
                           minval=0.05, maxval=0.95)                  # diffusion time
    z = jax.random.normal(k_z, (B, C, L), dtype=jnp.float32)          # provided noise

    noise, logsnr, (alpha_sq, sigma_sq) = diffusion_forward(y, y_l, band, t, z)
    jax.block_until_ready((noise, logsnr, alpha_sq, sigma_sq))

    # sanity-check against pure-JAX reference
    r_noise, r_logsnr, (r_alpha, r_sigma) = _ref_forward(t, z)
    assert noise.dtype == z.dtype and noise.shape == z.shape
    assert jnp.allclose(noise, r_noise)
    assert jnp.allclose(logsnr, r_logsnr, rtol=1e-5, atol=1e-5)
    assert jnp.allclose(alpha_sq, r_alpha, rtol=1e-5, atol=1e-5)
    assert jnp.allclose(sigma_sq, r_sigma, rtol=1e-5, atol=1e-5)

    print("KERNEL_OK")
</pallas_src>

<mosaic_0001>
module attributes {stable_mosaic.version = 11 : i64} {
  func.func @_snr_kernel(%arg0: memref<1x128xf32, #tpu.memory_space<vmem>>, %arg1: memref<3x128xf32, #tpu.memory_space<vmem>>) attributes {dimension_semantics = [], scalar_prefetch = 0 : i64, scratch_operands = 0 : i64, tpu.core_type = #tpu.core_type<tc>} {
    %c0 = arith.constant 0 : index
    %c0_0 = arith.constant 0 : index
    %0 = vector.load %arg0[%c0, %c0_0] : memref<1x128xf32, #tpu.memory_space<vmem>>, vector<1x128xf32>
    %cst = arith.constant 1.57070553 : f32
    %1 = vector.broadcast %cst : f32 to vector<1x128xf32>
    %2 = arith.mulf %1, %0 : vector<1x128xf32>
    %cst_1 = arith.constant 4.5399931E-5 : f32
    %3 = vector.broadcast %cst_1 : f32 to vector<1x128xf32>
    %4 = arith.addf %2, %3 : vector<1x128xf32>
    %5 = math.sin %4 : vector<1x128xf32>
    %6 = math.cos %4 : vector<1x128xf32>
    %7 = math.log %6 : vector<1x128xf32>
    %8 = math.log %5 : vector<1x128xf32>
    %9 = arith.subf %7, %8 : vector<1x128xf32>
    %cst_2 = arith.constant 2.000000e+00 : f32
    %10 = vector.broadcast %cst_2 : f32 to vector<1x128xf32>
    %11 = arith.mulf %10, %9 : vector<1x128xf32>
    %12 = arith.mulf %6, %6 : vector<1x128xf32>
    %13 = arith.mulf %5, %5 : vector<1x128xf32>
    %14 = tpu.concatenate %11, %12, %13 in 0 : vector<1x128xf32>, vector<1x128xf32>, vector<1x128xf32> -> vector<3x128xf32>
    %c0_3 = arith.constant 0 : index
    %c0_4 = arith.constant 0 : index
    %15 = vector.load %arg1[%c0_3, %c0_4] : memref<3x128xf32, #tpu.memory_space<vmem>>, vector<3x128xf32>
    tpu.vector_store %arg1[%c0_3, %c0_4], %14 {strides = array<i32>} : memref<3x128xf32, #tpu.memory_space<vmem>>, vector<3x128xf32>,
    return
  }
}

</mosaic_0001>

<llo_original>
// kernel: tpu_custom_call.1
$region0: #{tpu_custom_call.1}
  #allocation0 [shape = 'u32[]', space=smem, size = 0x4, offset = 0x4, fixed_abs, tag = 'smem constant byte address 0x4 - core index']
  #allocation1 [shape = 'u32[144,128]{1,0:T(1,128)}', space=vmem, size = 0x12000, scoped, tag = 'internal scratch']
  %s0 = inlined_call_operand.hbm [shape: f32[1,128], index: 0, kind: input, shape index: {}]
  %s1 = inlined_call_operand.hbm [shape: f32[3,128], index: 1, kind: output, shape index: {}]
  %s2 = sld [smem:[#allocation0]]
  $region18: #{tpu_custom_call.1} parent=0
    _
  %s4 = ssub.s32 1, %s2
  %s5 = scalar_select 0, %s4, %s2
  $region1: #{tpu_custom_call.1} parent=0
    #allocation2 [shape = 'u8[512]{0}', space=vmem, size = 0x400, scoped, tag = 'input window, operand 0, single buffered']
    #allocation3 [shape = 's32[1]{0}', space=sflag, size = 0x4, scoped, tag = 'scoped memory for tpu_custom_call.1']
    #allocation4 [shape = 's32[1]{0}', space=sflag, size = 0x4, scoped, tag = 'scoped memory for tpu_custom_call.1']
    #allocation5 [shape = 'u8[2048]{0}', space=vmem, size = 0x800, scoped, tag = 'output window, operand 0, single buffered']
    %6 = vsyncpa [#allocation3], 0
    %7 = vsyncpa [#allocation4], 0
    // Predicated region
    $region2: #{tpu_custom_call.1} parent=1 // pred_check
      _
    $region3: #{tpu_custom_call.1} parent=1 // pred_check_branch
      %9 = sbr.rel (0) target = $region5
    $region4: #{tpu_custom_call.1} parent=1 // pred_region
      %s11 = ssub.s32 16, 16
      %12 = vsyncadd [#allocation3], %s11
      %s14 = sshll.u32 [#allocation2], 4
      %s15 = int_to_ptr.vmem [resolvable:$true] %s14
      %17 = dma.hbm_to_vmem [thread:$0]  %s0, 16, %s15, [#allocation3]
    $region5: #{tpu_custom_call.1} parent=1 // pred_fallthru
      _
    // Predicated region
    $region6: #{tpu_custom_call.1} parent=1 // pred_check
      _
    $region7: #{tpu_custom_call.1} parent=1 // pred_check_branch
      %19 = sbr.rel (0) target = $region9
    $region8: #{tpu_custom_call.1} parent=1 // pred_region
      %20 = dma.done [#allocation3], 16
    $region9: #{tpu_custom_call.1} parent=1 // pred_fallthru
      _
    %v21 = vld [vmem:[#allocation2] sm:$0x1]
    %v22 = vmul.f32 %v21, 1.5707055
    %v23 = vadd.f32 %v22, 4.539993e-05
    %v24 = vand.u32 2147483647, %v23
    %vm25 = vcmp.le.f32.partialorder %v24, 0.7853982
    %vm26 = vcmp.lt.s32.totalorder %v23, 0
    %v27 = vand.u32 %v23, 2139095040
    %v28 = vshrl.u32 %v27, 23
    %v29 = vsub.s32 %v28, 127
    %v30 = vand.u32 2147483647, %v23
    %v31 = vand.u32 %v30, 8388607
    %v32 = vor.u32 %v31, 8388608
    %v33 = vsub.s32 0, %v32
    %v34 = vadd.s32 %v29, 1
    %vm35 = vcmp.gt.s32.totalorder %v34, 0
    %v36 = vsel %vm35, %v34, 0
    %v37 = vshrl.u32 %v36, 5
    %v38 = vand.u32 %v36, 31
    %v39 = vsub.s32 32, %v38
    %v40 = vshrl.u32 683565275, %v39
    %v41 = vshll.u32 683565275, %v38
    %v42 = vshrl.u32 2475754826, %v39
    %v43 = vor.u32 %v41, %v42
    %v44 = vshll.u32 2475754826, %v38
    %v45 = vshrl.u32 2131351028, %v39
    %v46 = vor.u32 %v44, %v45
    %v47 = vshll.u32 2131351028, %v38
    %v48 = vshrl.u32 2102212464, %v39
    %v49 = vor.u32 %v47, %v48
    %v50 = vshll.u32 2102212464, %v38
    %v51 = vshrl.u32 920167782, %v39
    %v52 = vor.u32 %v50, %v51
    %v53 = vshll.u32 920167782, %v38
    %v54 = vshrl.u32 1326507024, %v39
    %v55 = vor.u32 %v53, %v54
    %vm56 = vcmp.lt.s32.totalorder %v37, 1
    %vm57 = vcmp.lt.s32.totalorder %v37, 2
    %vm58 = vcmp.lt.s32.totalorder %v37, 3
    %vm59 = vcmp.lt.s32.totalorder %v37, 4
    %v60 = vsel %vm56, %v40, %v43
    %v61 = vsel %vm59, %v49, 2102212464
    %v62 = vsel %vm58, %v46, %v61
    %v63 = vsel %vm57, %v60, %v62
    %v64 = vsel %vm56, %v43, %v46
    %v65 = vsel %vm59, %v52, 920167782
    %v66 = vsel %vm58, %v49, %v65
    %v67 = vsel %vm57, %v64, %v66
    %v68 = vsel %vm56, %v46, %v49
    %v69 = vsel %vm59, %v55, 1326507024
    %v70 = vsel %vm58, %v52, %v69
    %v71 = vsel %vm57, %v68, %v70
    %v72 = vshll.u32 %v32, 8
    %v73 = vmul.u32.u64.compose %v72, %v71
    %v74 = vextract.low.u32 %v73
    %v75 = vextract.high.u32 %v73
    %v76 = vmul.u32.u64.compose %v72, %v67
    %v77 = vextract.low.u32 %v76
    %v78 = vextract.high.u32 %v76
    %v79 = vmul.u32 %v72, %v63
    %v80 = vadd.s32 %v75, %v77
    %vm81 = vc.u32 %v75, %v77
    %v82 = vadd.s32 %v78, 1
    %v83 = vsel %vm81, %v82, %v78
    %v84 = vadd.s32 %v79, %v83
    %v85 = vadd.s32 %v84, 536870912
    %v86 = vshrl.u32 %v85, 30
    %v87 = vshll.u32 %v86, 30
    %v88 = vsub.s32 %v84, %v87
    %vm89 = vcmp.lt.s32.totalorder %v88, 0
    %v90 = vsub.s32 0, %v88
    %v91 = vsel %vm89, %v90, %v88
    %v92 = vclz %v91
    %v93 = vsub.s32 %v92, 2
    %vm94 = vcmp.gt.s32.totalorder 0, %v93
    %v95 = vsel %vm94, 0, %v93
    %v96 = vsub.s32 32, %v95
    %v97 = vshll.u32 %v88, %v95
    %v98 = vshrl.u32 %v80, %v96
    %v99 = vor.u32 %v97, %v98
    %v100 = vsub.s32 4294967266, %v95
    %v101 = vadd.s32 %v100, 127
    %v102 = vshll.u32 %v101, 23
    %v103 = vor.u32 4788187, %v102
    %v104 = vand.u32 2147483647, %v103
    %v106 = vcvt.s32.f32 %v99
    %v107 = vmul.f32 %v106, %v104
    %v108 = vxor.u32 %v107, 2147483648
    %v109 = vsel %vm26, %v108, %v107
    %v110 = vsub.s32 4, %v86
    %v111 = vsel %vm26, %v110, %v86
    %v112 = vsel %vm25, %v23, %v109
    %v113 = vsel %vm25, 0, %v111
    %v114 = vcosq.f32.pop %v112
    %v115 = vsinq.f32.pop %v112
    %vm116 = vweird.f32 %v23
    %v117 = vadd.s32 %v113, 3
    %v118 = vand.u32 %v117, 3
    %vm119 = vcmp.lt.s32.totalorder %v118, 2
    %vm120 = vcmp.eq.s32.totalorder %v118, 0
    %v121 = vxor.u32 %v115, 2147483648
    %v122 = vsel %vm120, %v114, %v121
    %vm123 = vcmp.eq.s32.totalorder %v118, 2
    %v124 = vxor.u32 %v114, 2147483648
    %v125 = vsel %vm123, %v124, %v115
    %v126 = vsel %vm119, %v122, %v125
    %v127 = vsel %vm116, nan, %v126
    %v128 = vand.u32 2147483647, %v23
    %vm129 = vcmp.le.f32.partialorder %v128, 0.7853982
    %vm130 = vcmp.lt.s32.totalorder %v23, 0
    %v131 = vand.u32 %v23, 2139095040
    %v132 = vshrl.u32 %v131, 23
    %v133 = vsub.s32 %v132, 127
    %v134 = vand.u32 2147483647, %v23
    %v135 = vand.u32 %v134, 8388607
    %v136 = vor.u32 %v135, 8388608
    %v137 = vsub.s32 0, %v136
    %v138 = vadd.s32 %v133, 1
    %vm139 = vcmp.gt.s32.totalorder %v138, 0
    %v140 = vsel %vm139, %v138, 0
    %v141 = vshrl.u32 %v140, 5
    %v142 = vand.u32 %v140, 31
    %v143 = vsub.s32 32, %v142
    %v144 = vshrl.u32 683565275, %v143
    %v145 = vshll.u32 683565275, %v142
    %v146 = vshrl.u32 2475754826, %v143
    %v147 = vor.u32 %v145, %v146
    %v148 = vshll.u32 2475754826, %v142
    %v149 = vshrl.u32 2131351028, %v143
    %v150 = vor.u32 %v148, %v149
    %v151 = vshll.u32 2131351028, %v142
    %v152 = vshrl.u32 2102212464, %v143
    %v153 = vor.u32 %v151, %v152
    %v154 = vshll.u32 2102212464, %v142
    %v155 = vshrl.u32 920167782, %v143
    %v156 = vor.u32 %v154, %v155
    %v157 = vshll.u32 920167782, %v142
    %v158 = vshrl.u32 1326507024, %v143
    %v159 = vor.u32 %v157, %v158
    %vm160 = vcmp.lt.s32.totalorder %v141, 1
    %vm161 = vcmp.lt.s32.totalorder %v141, 2
    %vm162 = vcmp.lt.s32.totalorder %v141, 3
    %vm163 = vcmp.lt.s32.totalorder %v141, 4
    %v164 = vsel %vm160, %v144, %v147
    %v165 = vsel %vm163, %v153, 2102212464
    %v166 = vsel %vm162, %v150, %v165
    %v167 = vsel %vm161, %v164, %v166
    %v168 = vsel %vm160, %v147, %v150
    %v169 = vsel %vm163, %v156, 920167782
    %v170 = vsel %vm162, %v153, %v169
    %v171 = vsel %vm161, %v168, %v170
    %v172 = vsel %vm160, %v150, %v153
    %v173 = vsel %vm163, %v159, 1326507024
    %v174 = vsel %vm162, %v156, %v173
    %v175 = vsel %vm161, %v172, %v174
    %v176 = vshll.u32 %v136, 8
    %v177 = vmul.u32.u64.compose %v176, %v175
    %v178 = vextract.low.u32 %v177
    %v179 = vextract.high.u32 %v177
    %v180 = vmul.u32.u64.compose %v176, %v171
    %v181 = vextract.low.u32 %v180
    %v182 = vextract.high.u32 %v180
    %v183 = vmul.u32 %v176, %v167
    %v184 = vadd.s32 %v179, %v181
    %vm185 = vc.u32 %v179, %v181
    %v186 = vadd.s32 %v182, 1
    %v187 = vsel %vm185, %v186, %v182
    %v188 = vadd.s32 %v183, %v187
    %v189 = vadd.s32 %v188, 536870912
    %v190 = vshrl.u32 %v189, 30
    %v191 = vshll.u32 %v190, 30
    %v192 = vsub.s32 %v188, %v191
    %vm193 = vcmp.lt.s32.totalorder %v192, 0
    %v194 = vsub.s32 0, %v192
    %v195 = vsel %vm193, %v194, %v192
    %v196 = vclz %v195
    %v197 = vsub.s32 %v196, 2
    %vm198 = vcmp.gt.s32.totalorder 0, %v197
    %v199 = vsel %vm198, 0, %v197
    %v200 = vsub.s32 32, %v199
    %v201 = vshll.u32 %v192, %v199
    %v202 = vshrl.u32 %v184, %v200
    %v203 = vor.u32 %v201, %v202
    %v204 = vsub.s32 4294967266, %v199
    %v205 = vadd.s32 %v204, 127
    %v206 = vshll.u32 %v205, 23
    %v207 = vor.u32 4788187, %v206
    %v208 = vand.u32 2147483647, %v207
    %v210 = vcvt.s32.f32 %v203
    %v211 = vmul.f32 %v210, %v208
    %v212 = vxor.u32 %v211, 2147483648
    %v213 = vsel %vm130, %v212, %v211
    %v214 = vsub.s32 4, %v190
    %v215 = vsel %vm130, %v214, %v190
    %v216 = vsel %vm129, %v23, %v213
    %v217 = vsel %vm129, 0, %v215
    %v218 = vcosq.f32.pop %v216
    %v219 = vsinq.f32.pop %v216
    %vm220 = vweird.f32 %v23
    %v221 = vand.u32 %v217, 3
    %vm222 = vcmp.lt.s32.totalorder %v221, 2
    %vm223 = vcmp.eq.s32.totalorder %v221, 0
    %v224 = vxor.u32 %v219, 2147483648
    %v225 = vsel %vm223, %v218, %v224
    %vm226 = vcmp.eq.s32.totalorder %v221, 2
    %v227 = vxor.u32 %v218, 2147483648
    %v228 = vsel %vm226, %v227, %v219
    %v229 = vsel %vm222, %v225, %v228
    %v230 = vsel %vm220, nan, %v229
    %v231 = vlog2.pop %v230
    %v232 = vmul.f32 %v231, 0.6931472
    %v233 = vlog2.pop %v127
    %v234 = vmul.f32 %v233, 0.6931472
    %v235 = vsub.f32 %v232, %v234
    %v236 = vmul.f32 %v235, 2.0
    %v237 = vmul.f32 %v230, %v230
    %v238 = vmul.f32 %v127, %v127
    %v240 = vlaneseq
    %v241 = vshrl.u32 %v240, 7
    %v242 = vsub.s32 0, %v241
    %v243 = vrot.slane %v237, %v242
    %v246 = vlaneseq
    %v247 = vshrl.u32 %v246, 7
    %v248 = vsub.s32 0, %v247
    %v249 = vrot.slane %v238, %v248
    %vm251 = vcmask 1040384
    %v252 = vsel %vm251, %v236, %v243
    %vm253 = vcmask 1041408
    %v254 = vsel %vm253, %v252, %v249
    %255 = vst [vmem:[#allocation5] sm:$0x7] %v254
    // Predicated region
    $region10: #{tpu_custom_call.1} parent=1 // pred_check
      _
    $region11: #{tpu_custom_call.1} parent=1 // pred_check_branch
      %257 = sbr.rel (0) target = $region13
    $region12: #{tpu_custom_call.1} parent=1 // pred_region
      %s259 = ssub.s32 64, 64
      %260 = vsyncadd [#allocation4], %s259
      %s262 = sshll.u32 [#allocation5], 4
      %s263 = int_to_ptr.vmem [resolvable:$true] %s262
      %265 = dma.vmem_to_hbm [thread:$0]  %s263, 64, %s1, [#allocation4]
    $region13: #{tpu_custom_call.1} parent=1 // pred_fallthru
      _
    // Predicated region
    $region14: #{tpu_custom_call.1} parent=1 // pred_check
      _
    $region15: #{tpu_custom_call.1} parent=1 // pred_check_branch
      %267 = sbr.rel (0) target = $region17
    $region16: #{tpu_custom_call.1} parent=1 // pred_region
      %268 = dma.done [#allocation4], 64
    $region17: #{tpu_custom_call.1} parent=1 // pred_fallthru
      _
    %269 = vsyncpa [#allocation3], 1
    %270 = vsyncpa [#allocation4], 1

</llo_original>
